<compile_context>
chip_gen: v5e
topology: v5e:2x2
jax: 0.10.0
libtpu: 0.0.40
codegen_flags: <defaults>
</compile_context>

<pallas_src>
import functools

import jax
import jax.numpy as jnp
from jax.experimental import pallas as pl
from jax.experimental.pallas import tpu as pltpu

_LANE = 128


def _round_up(x, m):
    return (x + m - 1) // m * m


def _focal_loss_kernel(logits_ref, target_ref, out_ref, *, gamma, n_total, tile_n):
    pid = pl.program_id(0)

    logits = logits_ref[...].astype(jnp.float32)      # (tile_n, C)
    tgt = target_ref[...]                             # (tile_n, 1) int32
    tn, c = logits.shape

    # --- cross entropy (reduction='none'), numerically stable log-softmax ---
    m = jnp.max(logits, axis=-1, keepdims=True)                       # (tn, 1)
    lse = m + jnp.log(jnp.sum(jnp.exp(logits - m), axis=-1, keepdims=True))

    # gather the target-class logit via a one-hot mask (no dynamic gather on TPU)
    col = jax.lax.broadcasted_iota(jnp.int32, (tn, c), 1)
    onehot = col == tgt
    logit_t = jnp.sum(jnp.where(onehot, logits, 0.0), axis=-1, keepdims=True)

    logp = lse - logit_t                                              # per-sample NLL

    # --- focal weighting ---
    p = jnp.exp(-logp)
    one_minus_p = jnp.maximum(1.0 - p, 0.0)    # clamp rounding hazard (p > 1)
    g = float(gamma)
    if g == 0.0:
        loss = logp                            # (1 - p) ** 0 == 1
    elif g.is_integer() and g > 0:
        w = one_minus_p                        # multiply chain, stays on the VPU
        for _ in range(int(g) - 1):
            w = w * one_minus_p
        loss = w * logp
    else:
        loss = jnp.power(one_minus_p, g) * logp

    # --- mask rows beyond the true batch size (remainder tile) ---
    row = pid * tile_n + jax.lax.broadcasted_iota(jnp.int32, (tn, 1), 0)
    loss = jnp.where(row < n_total, loss, 0.0)

    # per-tile partial sum, broadcast into this tile's lane-dense output slot
    partial = jnp.sum(loss)
    out_ref[...] = jnp.full((1, _LANE), partial, dtype=jnp.float32)


def focal_loss(logits, target, gamma=0.0, eps=1e-7, tile_n=4096):
    """logits: (N, C) float (f32 or bf16), target: (N,) int -> scalar f32 mean focal loss."""
    del eps  # unused in the torch forward as well
    n, c = logits.shape
    tile_n = min(tile_n, _round_up(n, 8))      # sublane-aligned batch tile
    num_tiles = pl.cdiv(n, tile_n)
    target2d = target.astype(jnp.int32).reshape(n, 1)

    partials = pl.pallas_call(
        functools.partial(_focal_loss_kernel, gamma=gamma, n_total=n, tile_n=tile_n),
        out_shape=jax.ShapeDtypeStruct((1, _LANE * num_tiles), jnp.float32),
        grid=(num_tiles,),
        in_specs=[
            pl.BlockSpec((tile_n, c), lambda i: (i, 0)),
            pl.BlockSpec((tile_n, 1), lambda i: (i, 0)),
        ],
        out_specs=pl.BlockSpec((1, _LANE), lambda i: (0, i)),
        compiler_params=pltpu.CompilerParams(
            dimension_semantics=("parallel",),
            vmem_limit_bytes=32 * 1024 * 1024,
        ),
    )(logits, target2d)

    per_tile = partials.reshape(num_tiles, _LANE)[:, 0]
    return jnp.sum(per_tile) / jnp.float32(n)


def _focal_loss_ref(logits, target, gamma=0.0):
    logits = logits.astype(jnp.float32)
    logp_all = jax.nn.log_softmax(logits, axis=-1)
    logp = -jnp.take_along_axis(
        logp_all, target[:, None].astype(jnp.int32), axis=-1
    )[:, 0]
    p = jnp.exp(-logp)
    return jnp.mean(jnp.maximum(1.0 - p, 0.0) ** gamma * logp)


if __name__ == "__main__":
    key = jax.random.PRNGKey(0)
    k1, k2, k3, k4 = jax.random.split(key, 4)

    ok = True

    # Case 1: small batch, 16 classes, single tile.
    N, C = 8, 16
    logits = jax.random.normal(k1, (N, C), dtype=jnp.float32)
    target = jax.random.randint(k2, (N,), 0, C, dtype=jnp.int32)
    for gamma in (0.0, 2.0, 1.5):
        out = jax.block_until_ready(focal_loss(logits, target, gamma=gamma))
        ref = _focal_loss_ref(logits, target, gamma=gamma)
        if not jnp.allclose(out, ref, atol=1e-5, rtol=1e-5):
            ok = False
            print(f"MISMATCH case1 gamma={gamma}: kernel={out} ref={ref}")

    # Case 2: multi-tile grid with a remainder tile (masking path), bf16 inputs.
    N2, C2 = 100, 16
    logits2 = jax.random.normal(k3, (N2, C2), dtype=jnp.float32).astype(jnp.bfloat16)
    target2 = jax.random.randint(k4, (N2,), 0, C2, dtype=jnp.int32)
    for gamma in (0.0, 2.0):
        out = jax.block_until_ready(focal_loss(logits2, target2, gamma=gamma, tile_n=32))
        ref = _focal_loss_ref(logits2, target2, gamma=gamma)
        if not jnp.allclose(out, ref, atol=1e-4, rtol=1e-4):
            ok = False
            print(f"MISMATCH case2 gamma={gamma}: kernel={out} ref={ref}")

    if ok:
        print("KERNEL_OK")
</pallas_src>

<mosaic_0001>
module attributes {stable_mosaic.version = 11 : i64} {
  func.func @_focal_loss_kernel(%arg0: i32, %arg1: memref<8x16xf32, #tpu.memory_space<vmem>>, %arg2: memref<8x1xi32, #tpu.memory_space<vmem>>, %arg3: memref<1x128xf32, #tpu.memory_space<vmem>>) attributes {dimension_semantics = [#tpu.dimension_semantics<parallel>], iteration_bounds = array<i64: 1>, scalar_prefetch = 0 : i64, scratch_operands = 0 : i64, tpu.core_type = #tpu.core_type<tc>, window_params = [{transform_indices = @transform_0, window_bounds = array<i64: 8, 16>}, {transform_indices = @transform_1, window_bounds = array<i64: 8, 1>}, {transform_indices = @transform_2, window_bounds = array<i64: 1, 128>}]} {
    %c0 = arith.constant 0 : index
    %c0_0 = arith.constant 0 : index
    %0 = vector.load %arg1[%c0, %c0_0] : memref<8x16xf32, #tpu.memory_space<vmem>>, vector<8x16xf32>
    %c0_1 = arith.constant 0 : index
    %c0_2 = arith.constant 0 : index
    %1 = vector.load %arg2[%c0_1, %c0_2] : memref<8x1xi32, #tpu.memory_space<vmem>>, vector<8x1xi32>
    %cst = arith.constant dense<0xFF800000> : vector<8xf32>
    %2 = vector.multi_reduction <maximumf>, %0, %cst [1] : vector<8x16xf32> to vector<8xf32>
    %3 = vector.shape_cast %2 : vector<8xf32> to vector<8x1xf32>
    %4 = vector.broadcast %3 : vector<8x1xf32> to vector<8x16xf32>
    %5 = arith.subf %0, %4 : vector<8x16xf32>
    %6 = math.exp %5 : vector<8x16xf32>
    %cst_3 = arith.constant dense<0.000000e+00> : vector<8xf32>
    %7 = vector.multi_reduction <add>, %6, %cst_3 [1] : vector<8x16xf32> to vector<8xf32>
    %8 = vector.shape_cast %7 : vector<8xf32> to vector<8x1xf32>
    %9 = math.log %8 : vector<8x1xf32>
    %10 = arith.addf %3, %9 : vector<8x1xf32>
    %11 = tpu.iota {dimensions = array<i32: 1>} : vector<8x16xi32>
    %12 = vector.broadcast %1 : vector<8x1xi32> to vector<8x16xi32>
    %13 = arith.cmpi eq, %11, %12 : vector<8x16xi32>
    %cst_4 = arith.constant 0.000000e+00 : f32
    %14 = vector.broadcast %cst_4 : f32 to vector<8x16xf32>
    %15 = arith.select %13, %0, %14 : vector<8x16xi1>, vector<8x16xf32>
    %cst_5 = arith.constant dense<0.000000e+00> : vector<8xf32>
    %16 = vector.multi_reduction <add>, %15, %cst_5 [1] : vector<8x16xf32> to vector<8xf32>
    %17 = vector.shape_cast %16 : vector<8xf32> to vector<8x1xf32>
    %18 = arith.subf %10, %17 : vector<8x1xf32>
    %c8_i32 = arith.constant 8 : i32
    %19 = arith.muli %arg0, %c8_i32 : i32
    %20 = tpu.iota {dimensions = array<i32: 0>} : vector<8x1xi32>
    %21 = vector.broadcast %19 : i32 to vector<8x1xi32>
    %22 = arith.addi %21, %20 : vector<8x1xi32>
    %c8_i32_6 = arith.constant 8 : i32
    %23 = vector.broadcast %c8_i32_6 : i32 to vector<8x1xi32>
    %24 = arith.cmpi slt, %22, %23 : vector<8x1xi32>
    %cst_7 = arith.constant 0.000000e+00 : f32
    %25 = vector.broadcast %cst_7 : f32 to vector<8x1xf32>
    %26 = arith.select %24, %18, %25 : vector<8x1xi1>, vector<8x1xf32>
    %27 = vector.shape_cast %26 : vector<8x1xf32> to vector<1x8x1xf32>
    %cst_8 = arith.constant dense<0.000000e+00> : vector<1xf32>
    %28 = vector.multi_reduction <add>, %27, %cst_8 [1, 2] : vector<1x8x1xf32> to vector<1xf32>
    %29 = vector.shape_cast %28 : vector<1xf32> to vector<1x1x1xf32>
    %30 = vector.extract %29[0, 0, 0] : f32 from vector<1x1x1xf32>
    %31 = vector.broadcast %30 : f32 to vector<1x128xf32>
    %c0_9 = arith.constant 0 : index
    %c0_10 = arith.constant 0 : index
    %32 = vector.load %arg3[%c0_9, %c0_10] : memref<1x128xf32, #tpu.memory_space<vmem>>, vector<1x128xf32>
    tpu.vector_store %arg3[%c0_9, %c0_10], %31 {strides = array<i32>} : memref<1x128xf32, #tpu.memory_space<vmem>>, vector<1x128xf32>,
    return
  }
  func.func @transform_0(%arg0: i32) -> (i32, i32) {
    %c0_i32 = arith.constant 0 : i32
    %c0_i32_0 = arith.constant 0 : i32
    return %arg0, %c0_i32 : i32, i32
  }
  func.func @transform_1(%arg0: i32) -> (i32, i32) {
    %c0_i32 = arith.constant 0 : i32
    %c0_i32_0 = arith.constant 0 : i32
    return %arg0, %c0_i32 : i32, i32
  }
  func.func @transform_2(%arg0: i32) -> (i32, i32) {
    %c0_i32 = arith.constant 0 : i32
    %c0_i32_0 = arith.constant 0 : i32
    return %c0_i32, %arg0 : i32, i32
  }
}

</mosaic_0001>

<llo_original>
// kernel: tpu_custom_call.1
$region0: #{tpu_custom_call.1}
  #allocation0 [shape = 'u32[]', space=smem, size = 0x4, offset = 0x4, fixed_abs, tag = 'smem constant byte address 0x4 - core index']
  #allocation1 [shape = 'u32[72,128]{1,0:T(1,128)}', space=vmem, size = 0x9000, scoped, tag = 'internal scratch']
  %s0 = inlined_call_operand.vmem [shape: f32[8,16], index: 0, kind: input, shape index: {}]
  %s1 = inlined_call_operand.vmem [shape: s32[8,1], index: 1, kind: input, shape index: {}]
  %s2 = inlined_call_operand.hbm [shape: f32[1,128], index: 2, kind: output, shape index: {}]
  %s3 = sld [smem:[#allocation0]]
  $region18: #{tpu_custom_call.1} parent=0
    _
  %s5 = ssub.s32 1, %s3
  %s6 = scalar_select 0, %s5, %s3
  $region1: #{tpu_custom_call.1} parent=0
    #allocation2 [shape = 'u8[512]{0}', space=vmem, size = 0x400, scoped, tag = 'output window, operand 0, single buffered']
    #allocation3 [shape = 's32[1]{0}', space=sflag, size = 0x4, scoped, tag = 'scoped memory for tpu_custom_call.1']
    %7 = vsyncpa [#allocation3], 0
    // Predicated region
    $region2: #{tpu_custom_call.1} parent=1 // pred_check
      _
    $region3: #{tpu_custom_call.1} parent=1 // pred_check_branch
      %9 = sbr.rel (0) target = $region5
    $region4: #{tpu_custom_call.1} parent=1 // pred_region
      _
    $region5: #{tpu_custom_call.1} parent=1 // pred_fallthru
      _
    // Predicated region
    $region6: #{tpu_custom_call.1} parent=1 // pred_check
      _
    $region7: #{tpu_custom_call.1} parent=1 // pred_check_branch
      %11 = sbr.rel (0) target = $region9
    $region8: #{tpu_custom_call.1} parent=1 // pred_region
      _
    $region9: #{tpu_custom_call.1} parent=1 // pred_fallthru
      _
    %v12 = vld [vmem:[%s0] sm:$0xff]
    %v13 = vld [vmem:[%s1] sm:$0xff]
    %vm14 = vcmask 130048
    %v15 = vsel %vm14, %v12, -inf
    %16 = vmax.xlane.f32.xlu0 %v15
    %v17 = vpop.xlane.xlu0 %16
    %v18 = vsub.f32 %v12, %v17
    %v19 = vmul.f32 %v18, 1.442695
    %v20 = vpow.pop %v19
    %v21 = vsel %vm14, %v20, 0.0
    %22 = vadd.xlane.f32.xlu0 %v21
    %v23 = vpop.xlane.xlu0 %22
    %v24 = vlog2.pop %v23
    %v25 = vmul.f32 %v24, 0.6931472
    %v26 = vadd.f32 %v17, %v25
    %v27 = vlaneseq
    %v28 = vand.u32 %v27, 127
    %29 = vset.pattern.permute.xlu0 0
    %30 = vperm.xlu0 %29, %v13
    %v31 = vpop.permute.xlu0 %30
    %vm32 = vcmp.eq.s32.totalorder %v28, %v31
    %v33 = vsel %vm32, %v12, 0.0
    %v34 = vsel %vm14, %v33, 0.0
    %35 = vadd.xlane.f32.xlu0 %v34
    %v36 = vpop.xlane.xlu0 %35
    %v37 = vsub.f32 %v26, %v36
    %s38 = smul.u32 0, 8
    %v39 = vlaneseq
    %v40 = vshrl.u32 %v39, 7
    %v41 = vstv %s38
    %v42 = vadd.s32 %v41, %v40
    %vm43 = vcmp.lt.s32.totalorder %v42, 8
    %v44 = vsel %vm43, %v37, 0.0
    %vm45 = vcmask 7168
    %v46 = vsel %vm45, %v44, 0.0
    %47 = vadd.xlane.f32.xlu0 %v46
    %v48 = vpop.xlane.xlu0 %47
    %v49 = vrot.slane %v48, 4
    %v50 = vadd.f32 %v48, %v49
    %v51 = vrot.slane %v50, 2
    %v52 = vadd.f32 %v50, %v51
    %v53 = vrot.slane %v52, 1
    %v54 = vadd.f32 %v52, %v53
    %s55 = vtos %v54
    %v56 = vstv %s55
    %57 = vst [vmem:[#allocation2] sm:$0x1] %v56
    // Predicated region
    $region10: #{tpu_custom_call.1} parent=1 // pred_check
      _
    $region11: #{tpu_custom_call.1} parent=1 // pred_check_branch
      %59 = sbr.rel (0) target = $region13
    $region12: #{tpu_custom_call.1} parent=1 // pred_region
      %61 = vsyncadd [#allocation3], 0
      %s63 = sshll.u32 [#allocation2], 4
      %s64 = int_to_ptr.vmem [resolvable:$true] %s63
      %s65 = sshll.u32 %s2, 4
      %s66 = int_to_ptr.hbm [resolvable:$true] %s65
      %68 = dma.vmem_to_hbm [thread:$0]  %s64, 16, %s66, [#allocation3]
    $region13: #{tpu_custom_call.1} parent=1 // pred_fallthru
      _
    // Predicated region
    $region14: #{tpu_custom_call.1} parent=1 // pred_check
      _
    $region15: #{tpu_custom_call.1} parent=1 // pred_check_branch
      %70 = sbr.rel (0) target = $region17
    $region16: #{tpu_custom_call.1} parent=1 // pred_region
      %72 = dma.done [#allocation3], 16
    $region17: #{tpu_custom_call.1} parent=1 // pred_fallthru
      _
    %73 = vsyncpa [#allocation3], 1

</llo_original>
